<compile_context>
chip_gen: v6e
topology: v6e:2x2x1
jax: 0.10.0
libtpu: 0.0.40
codegen_flags: <defaults>
</compile_context>

<pallas_src>
import jax
import jax.numpy as jnp
from jax.experimental import pallas as pl
from jax.experimental.pallas import tpu as pltpu

LANES = 128


def linear_clamp_kernel(x_ref, w_ref, b_ref, o_ref):
    # x_ref: (bm, 128) lane-dense packed rows (8 original 16-wide rows per packed row)
    # w_ref: (128, 128) block-diagonal weight (8 copies of W^T), grid-invariant
    # b_ref: (1, 128)   bias tiled 8x
    # o_ref: (bm, 128)  lane-dense packed output
    y = jnp.dot(x_ref[...], w_ref[...], preferred_element_type=jnp.float32)
    y = y + b_ref[...]
    y = jnp.maximum(y, jnp.float32(0.1))   # clamp_min
    y = jnp.minimum(y, jnp.float32(0.3))   # clamp_max
    o_ref[...] = y.astype(o_ref.dtype)


def linear_clamp(x, weight, bias, *, block_rows_packed=2048):
    """y = clip(x @ weight.T + bias, 0.1, 0.3).

    x: (M, K) f32, weight: (N, K) f32 (PyTorch layout), bias: (N,) f32, K == N == 16.

    The wrapper repacks the problem lane-dense:
      x (M,16)  -> (M/8, 128)                      (free view of contiguous rows)
      W (16,16) -> (128,128) block-diag of W^T     (one-time ~64 KiB transform)
      b (16,)   -> (1,128) tiled
    so all loads/stores are unmasked full-lane and the MXU sees 128-wide operands.
    """
    M, K = x.shape
    N, Kw = weight.shape
    assert K == Kw
    assert LANES % N == 0
    pack = LANES // N                      # 8 original rows per packed row
    assert pack * K == LANES

    # Pad M up to a multiple of `pack` so the lane-dense view is exact.
    M_pad = ((M + pack - 1) // pack) * pack
    if M_pad != M:
        x = jnp.pad(x, ((0, M_pad - M), (0, 0)))
    Mp = M_pad // pack

    xp = x.reshape(Mp, LANES)                                         # lane-dense view
    w_big = jnp.kron(jnp.eye(pack, dtype=x.dtype), weight.T)          # (128,128), (K,N) orient
    b_big = jnp.tile(bias.reshape(1, N), (1, pack)).astype(x.dtype)   # (1,128)

    # Tile the packed-row axis: MiB-scale tiles, multiples of 8 sublanes, and
    # at least 2 grid steps for large M (so both v7x TensorCores get work).
    if Mp <= 8:
        bm = Mp                                  # single full-array block
    else:
        half = -(-Mp // 2)
        half = ((half + 7) // 8) * 8
        bm = max(8, min(block_rows_packed, half))
    grid = (pl.cdiv(Mp, bm),)

    flops = 2 * M * K * N
    bytes_accessed = (xp.size + w_big.size + b_big.size + Mp * LANES) * 4

    out_p = pl.pallas_call(
        linear_clamp_kernel,
        out_shape=jax.ShapeDtypeStruct((Mp, LANES), x.dtype),
        grid=grid,
        in_specs=[
            pl.BlockSpec((bm, LANES), lambda i: (i, 0)),       # packed x tile over M
            pl.BlockSpec((LANES, LANES), lambda i: (0, 0)),    # block-diag weight, resident
            pl.BlockSpec((1, LANES), lambda i: (0, 0)),        # tiled bias, resident
        ],
        out_specs=pl.BlockSpec((bm, LANES), lambda i: (i, 0)),
        compiler_params=pltpu.CompilerParams(
            dimension_semantics=("parallel",),
        ),
        cost_estimate=pl.CostEstimate(
            flops=flops, transcendentals=0, bytes_accessed=bytes_accessed),
    )(xp, w_big, b_big)

    out = out_p.reshape(M_pad, N)
    if M_pad != M:
        out = out[:M]
    return out


if __name__ == "__main__":
    key = jax.random.PRNGKey(0)
    kx, kw, kb = jax.random.split(key, 3)

    # Shapes implied by the module: x = (32, 16), Linear(16, 16)
    M, K, N = 32, 16, 16
    x = jax.random.normal(kx, (M, K), dtype=jnp.float32)
    # Deterministic PyTorch-style uniform(-1/sqrt(K), 1/sqrt(K)) init
    bound = 1.0 / jnp.sqrt(jnp.float32(K))
    weight = jax.random.uniform(kw, (N, K), dtype=jnp.float32, minval=-bound, maxval=bound)
    bias = jax.random.uniform(kb, (N,), dtype=jnp.float32, minval=-bound, maxval=bound)

    # --- spec-sized run (single grid step, full-array block) ---
    out = jax.block_until_ready(linear_clamp(x, weight, bias))
    ref = jnp.clip(x @ weight.T + bias, 0.1, 0.3)
    assert out.shape == (M, N)
    assert jnp.allclose(out, ref, atol=1e-5, rtol=1e-5)

    # --- batched run: many stacked rows -> multi-step parallel grid ---
    xb = jax.random.normal(jax.random.PRNGKey(1), (1024, K), dtype=jnp.float32)
    outb = jax.block_until_ready(linear_clamp(xb, weight, bias))
    refb = jnp.clip(xb @ weight.T + bias, 0.1, 0.3)
    assert outb.shape == (1024, N)
    assert jnp.allclose(outb, refb, atol=1e-5, rtol=1e-5)

    # --- row count not a multiple of 8 -> exercises the padding path ---
    xc = jax.random.normal(jax.random.PRNGKey(2), (50, K), dtype=jnp.float32)
    outc = jax.block_until_ready(linear_clamp(xc, weight, bias))
    refc = jnp.clip(xc @ weight.T + bias, 0.1, 0.3)
    assert outc.shape == (50, N)
    assert jnp.allclose(outc, refc, atol=1e-5, rtol=1e-5)

    print("KERNEL_OK")
</pallas_src>

<mosaic_0001>
module attributes {stable_mosaic.version = 11 : i64} {
  func.func @linear_clamp_kernel(%arg0: i32, %arg1: memref<4x128xf32, #tpu.memory_space<vmem>>, %arg2: memref<128x128xf32, #tpu.memory_space<vmem>>, %arg3: memref<1x128xf32, #tpu.memory_space<vmem>>, %arg4: memref<4x128xf32, #tpu.memory_space<vmem>>) attributes {dimension_semantics = [#tpu.dimension_semantics<parallel>], iteration_bounds = array<i64: 1>, scalar_prefetch = 0 : i64, scratch_operands = 0 : i64, tpu.core_type = #tpu.core_type<tc>, window_params = [{transform_indices = @transform_0, window_bounds = array<i64: 4, 128>}, {pipeline_mode = #tpu.pipeline_mode<synchronous>, transform_indices = @transform_1, window_bounds = array<i64: 128, 128>}, {pipeline_mode = #tpu.pipeline_mode<synchronous>, transform_indices = @transform_2, window_bounds = array<i64: 1, 128>}, {transform_indices = @transform_3, window_bounds = array<i64: 4, 128>}]} {
    %c0 = arith.constant 0 : index
    %c0_0 = arith.constant 0 : index
    %0 = vector.load %arg1[%c0, %c0_0] : memref<4x128xf32, #tpu.memory_space<vmem>>, vector<4x128xf32>
    %c0_1 = arith.constant 0 : index
    %c0_2 = arith.constant 0 : index
    %1 = vector.load %arg2[%c0_1, %c0_2] : memref<128x128xf32, #tpu.memory_space<vmem>>, vector<128x128xf32>
    %cst = arith.constant dense<0.000000e+00> : vector<4x128xf32>
    %2 = tpu.matmul %0, %1, %cst {dimension_numbers = #tpu.dot_dimension_numbers<[1], [0], [0], [1], [0, 0, 1, 1], [], []>} : vector<4x128xf32>, vector<128x128xf32>, vector<4x128xf32> -> vector<4x128xf32>
    %c0_3 = arith.constant 0 : index
    %c0_4 = arith.constant 0 : index
    %3 = vector.load %arg3[%c0_3, %c0_4] : memref<1x128xf32, #tpu.memory_space<vmem>>, vector<1x128xf32>
    %4 = vector.broadcast %3 : vector<1x128xf32> to vector<4x128xf32>
    %5 = arith.addf %2, %4 : vector<4x128xf32>
    %cst_5 = arith.constant 1.000000e-01 : f32
    %6 = vector.broadcast %cst_5 : f32 to vector<4x128xf32>
    %7 = arith.maximumf %5, %6 : vector<4x128xf32>
    %cst_6 = arith.constant 3.000000e-01 : f32
    %8 = vector.broadcast %cst_6 : f32 to vector<4x128xf32>
    %9 = arith.minimumf %7, %8 : vector<4x128xf32>
    %c0_7 = arith.constant 0 : index
    %c0_8 = arith.constant 0 : index
    %10 = vector.load %arg4[%c0_7, %c0_8] : memref<4x128xf32, #tpu.memory_space<vmem>>, vector<4x128xf32>
    tpu.vector_store %arg4[%c0_7, %c0_8], %9 {strides = array<i32>} : memref<4x128xf32, #tpu.memory_space<vmem>>, vector<4x128xf32>,
    return
  }
  func.func @transform_0(%arg0: i32) -> (i32, i32) {
    %c0_i32 = arith.constant 0 : i32
    %c0_i32_0 = arith.constant 0 : i32
    return %arg0, %c0_i32 : i32, i32
  }
  func.func @transform_1(%arg0: i32) -> (i32, i32) {
    %c0_i32 = arith.constant 0 : i32
    %c0_i32_0 = arith.constant 0 : i32
    %c0_i32_1 = arith.constant 0 : i32
    return %c0_i32, %c0_i32_0 : i32, i32
  }
  func.func @transform_2(%arg0: i32) -> (i32, i32) {
    %c0_i32 = arith.constant 0 : i32
    %c0_i32_0 = arith.constant 0 : i32
    %c0_i32_1 = arith.constant 0 : i32
    return %c0_i32, %c0_i32_0 : i32, i32
  }
  func.func @transform_3(%arg0: i32) -> (i32, i32) {
    %c0_i32 = arith.constant 0 : i32
    %c0_i32_0 = arith.constant 0 : i32
    return %arg0, %c0_i32 : i32, i32
  }
}

</mosaic_0001>

<llo_original>
// kernel: tpu_custom_call.1
$region0: #{tpu_custom_call.1}
  #allocation0 [shape = 'u32[]', space=smem, size = 0x4, offset = 0x4, fixed_abs, tag = 'smem constant byte address 0x4 - core index']
  #allocation1 [shape = 'u32[144,128]{1,0:T(1,128)}', space=vmem, size = 0x12000, scoped, tag = 'internal scratch']
  %s0 = inlined_call_operand.hbm [shape: f32[4,128], index: 0, kind: input, shape index: {}]
  %s1 = inlined_call_operand.hbm [shape: f32[128,128], index: 1, kind: input, shape index: {}]
  %s2 = inlined_call_operand.vmem [shape: f32[1,128], index: 2, kind: input, shape index: {}]
  %s3 = inlined_call_operand.hbm [shape: f32[4,128], index: 3, kind: output, shape index: {}]
  %s4 = sld [smem:[#allocation0]]
  $region30: #{tpu_custom_call.1} parent=0
    _
  %s6 = ssub.s32 1, %s4
  %s7 = scalar_select 0, %s6, %s4
  $region1: #{tpu_custom_call.1} parent=0
    #allocation2 [shape = 'u8[2048]{0}', space=vmem, size = 0x800, scoped, tag = 'input window, operand 0, single buffered']
    #allocation3 [shape = 's32[1]{0}', space=sflag, size = 0x4, scoped, tag = 'scoped memory for tpu_custom_call.1']
    #allocation4 [shape = 's32[1]{0}', space=sflag, size = 0x4, scoped, tag = 'scoped memory for tpu_custom_call.1']
    #allocation5 [shape = 'u8[65536]{0}', space=vmem, size = 0x10000, scoped, tag = 'input window, operand 1, single buffered']
    #allocation6 [shape = 's32[1]{0}', space=sflag, size = 0x4, scoped, tag = 'scoped memory for tpu_custom_call.1']
    #allocation7 [shape = 'u8[2048]{0}', space=vmem, size = 0x800, scoped, tag = 'output window, operand 0, single buffered']
    %8 = vsyncpa [#allocation3], 0
    %9 = vsyncpa [#allocation6], 0
    %10 = vsyncpa [#allocation4], 0
    // Predicated region
    $region2: #{tpu_custom_call.1} parent=1 // pred_check
      _
    $region3: #{tpu_custom_call.1} parent=1 // pred_check_branch
      %12 = sbr.rel (0) target = $region5
    $region4: #{tpu_custom_call.1} parent=1 // pred_region
      %s14 = ssub.s32 64, 64
      %15 = vsyncadd [#allocation3], %s14
      %s17 = sshll.u32 [#allocation2], 4
      %s18 = int_to_ptr.vmem [resolvable:$true] %s17
      %20 = dma.hbm_to_vmem [thread:$0]  %s0, 64, %s18, [#allocation3]
    $region5: #{tpu_custom_call.1} parent=1 // pred_fallthru
      _
    // Predicated region
    $region6: #{tpu_custom_call.1} parent=1 // pred_check
      _
    $region7: #{tpu_custom_call.1} parent=1 // pred_check_branch
      %22 = sbr.rel (0) target = $region9
    $region8: #{tpu_custom_call.1} parent=1 // pred_region
      %s24 = ssub.s32 2048, 2048
      %25 = vsyncadd [#allocation6], %s24
      %s26 = sshll.u32 [#allocation5], 4
      %s27 = int_to_ptr.vmem [resolvable:$true] %s26
      %32 = dma.hbm_to_vmem [thread:$0]  %s1, 2048, %s27, [#allocation6], 128, 128, 8
    $region9: #{tpu_custom_call.1} parent=1 // pred_fallthru
      _
    // Predicated region
    $region10: #{tpu_custom_call.1} parent=1 // pred_check
      _
    $region11: #{tpu_custom_call.1} parent=1 // pred_check_branch
      %34 = sbr.rel (0) target = $region13
    $region12: #{tpu_custom_call.1} parent=1 // pred_region
      _
    $region13: #{tpu_custom_call.1} parent=1 // pred_fallthru
      _
    // Predicated region
    $region14: #{tpu_custom_call.1} parent=1 // pred_check
      _
    $region15: #{tpu_custom_call.1} parent=1 // pred_check_branch
      %36 = sbr.rel (0) target = $region17
    $region16: #{tpu_custom_call.1} parent=1 // pred_region
      %37 = dma.done [#allocation3], 64
    $region17: #{tpu_custom_call.1} parent=1 // pred_fallthru
      _
    // Predicated region
    $region18: #{tpu_custom_call.1} parent=1 // pred_check
      _
    $region19: #{tpu_custom_call.1} parent=1 // pred_check_branch
      %39 = sbr.rel (0) target = $region21
    $region20: #{tpu_custom_call.1} parent=1 // pred_region
      %40 = dma.done [#allocation6], 2048
    $region21: #{tpu_custom_call.1} parent=1 // pred_fallthru
      _
    %v41 = vld [vmem:[#allocation2] sm:$0xf]
    %v42 = vld [vmem:[#allocation5] sm:$0xff]
    %v43 = vld [vmem:[#allocation5 + $0x8] sm:$0xff]
    %v44 = vld [vmem:[#allocation5 + $0x10] sm:$0xff]
    %v45 = vld [vmem:[#allocation5 + $0x18] sm:$0xff]
    %v46 = vld [vmem:[#allocation5 + $0x20] sm:$0xff]
    %v47 = vld [vmem:[#allocation5 + $0x28] sm:$0xff]
    %v48 = vld [vmem:[#allocation5 + $0x30] sm:$0xff]
    %v49 = vld [vmem:[#allocation5 + $0x38] sm:$0xff]
    %v50 = vld [vmem:[#allocation5 + $0x40] sm:$0xff]
    %v51 = vld [vmem:[#allocation5 + $0x48] sm:$0xff]
    %v52 = vld [vmem:[#allocation5 + $0x50] sm:$0xff]
    %v53 = vld [vmem:[#allocation5 + $0x58] sm:$0xff]
    %v54 = vld [vmem:[#allocation5 + $0x60] sm:$0xff]
    %v55 = vld [vmem:[#allocation5 + $0x68] sm:$0xff]
    %v56 = vld [vmem:[#allocation5 + $0x70] sm:$0xff]
    %v57 = vld [vmem:[#allocation5 + $0x78] sm:$0xff]
    %v58 = vld [vmem:[%s2] sm:$0x1]
    %v60 = vlaneseq
    %v61 = vshrl.u32 %v60, 7
    %v62 = vsub.s32 0, %v61
    %v63 = vrot.slane %v58, %v62
    %65 = vmatprep.subr.mxu0 0.0
    %66 = vmatpush1.msra.mxu0 %v57
    %67 = vmatprep.subr.mxu0 0.0
    %68 = vmatpush1.msra.mxu0 %v56
    %69 = vmatprep.subr.mxu0 0.0
    %70 = vmatpush1.msra.mxu0 %v55
    %71 = vmatprep.subr.mxu0 0.0
    %72 = vmatpush1.msra.mxu0 %v54
    %73 = vmatprep.subr.mxu0 0.0
    %74 = vmatpush1.msra.mxu0 %v53
    %75 = vmatprep.subr.mxu0 0.0
    %76 = vmatpush1.msra.mxu0 %v52
    %77 = vmatprep.subr.mxu0 0.0
    %78 = vmatpush1.msra.mxu0 %v51
    %79 = vmatprep.subr.mxu0 0.0
    %80 = vmatpush1.msra.mxu0 %v50
    %81 = vmatprep.subr.mxu0 0.0
    %82 = vmatpush1.msra.mxu0 %v49
    %83 = vmatprep.subr.mxu0 0.0
    %84 = vmatpush1.msra.mxu0 %v48
    %85 = vmatprep.subr.mxu0 0.0
    %86 = vmatpush1.msra.mxu0 %v47
    %87 = vmatprep.subr.mxu0 0.0
    %88 = vmatpush1.msra.mxu0 %v46
    %89 = vmatprep.subr.mxu0 0.0
    %90 = vmatpush1.msra.mxu0 %v45
    %91 = vmatprep.subr.mxu0 0.0
    %92 = vmatpush1.msra.mxu0 %v44
    %93 = vmatprep.subr.mxu0 0.0
    %94 = vmatpush1.msra.mxu0 %v43
    %95 = vmatprep.subr.mxu0 0.0
    %96 = vmatpush1.msra.mxu0 %v42
    %97 = vmatprep.subr.mxu0 0.0
    %98 = vmatpush2.msra.mxu0 0.0
    %99 = vmatprep.subr.mxu0 0.0
    %100 = vmatpush2.msra.mxu0 0.0
    %101 = vmatprep.subr.mxu0 0.0
    %102 = vmatpush2.msra.mxu0 0.0
    %103 = vmatprep.subr.mxu0 0.0
    %104 = vmatpush2.msra.mxu0 0.0
    %105 = vmatprep.subr.mxu0 0.0
    %106 = vmatpush2.msra.mxu0 0.0
    %107 = vmatprep.subr.mxu0 0.0
    %108 = vmatpush2.msra.mxu0 0.0
    %109 = vmatprep.subr.mxu0 0.0
    %110 = vmatpush2.msra.mxu0 0.0
    %111 = vmatprep.subr.mxu0 0.0
    %112 = vmatpush2.msra.mxu0 0.0
    %113 = vmatprep.subr.mxu0 0.0
    %114 = vmatpush2.msra.mxu0 0.0
    %115 = vmatprep.subr.mxu0 0.0
    %116 = vmatpush2.msra.mxu0 0.0
    %117 = vmatprep.subr.mxu0 0.0
    %118 = vmatpush2.msra.mxu0 0.0
    %119 = vmatprep.subr.mxu0 0.0
    %120 = vmatpush2.msra.mxu0 0.0
    %121 = vmatprep.subr.mxu0 0.0
    %122 = vmatpush2.msra.mxu0 0.0
    %123 = vmatprep.subr.mxu0 0.0
    %124 = vmatpush2.msra.mxu0 0.0
    %125 = vmatprep.subr.mxu0 0.0
    %126 = vmatpush2.msra.mxu0 0.0
    %127 = vmatprep.subr.mxu0 0.0
    %128 = vmatpush2.msra.mxu0 0.0
    %129 = vmatprep.mubr.f32.mxu0 0.0
    %130 = vmatmul.mubr.f32.gmra.mxu0 %v41
    %v131 = vpop.f32.mrf.mxu0
    %v132 = vadd.f32 %v63, %v131
    %v133 = vpop.f32.mrf.mxu0
    %134 = vdwg.mxu0
    %v135 = vmax.f32 %v132, 0.1
    %v136 = vmin.f32 %v135, 0.3
    %137 = vst [vmem:[#allocation7] sm:$0xf] %v136
    // Predicated region
    $region22: #{tpu_custom_call.1} parent=1 // pred_check
      _
    $region23: #{tpu_custom_call.1} parent=1 // pred_check_branch
      %139 = sbr.rel (0) target = $region25
    $region24: #{tpu_custom_call.1} parent=1 // pred_region
      %s141 = ssub.s32 64, 64
      %142 = vsyncadd [#allocation4], %s141
      %s144 = sshll.u32 [#allocation7], 4
      %s145 = int_to_ptr.vmem [resolvable:$true] %s144
      %147 = dma.vmem_to_hbm [thread:$0]  %s145, 64, %s3, [#allocation4]
    $region25: #{tpu_custom_call.1} parent=1 // pred_fallthru
      _
    // Predicated region
    $region26: #{tpu_custom_call.1} parent=1 // pred_check
      _
    $region27: #{tpu_custom_call.1} parent=1 // pred_check_branch
      %149 = sbr.rel (0) target = $region29
    $region28: #{tpu_custom_call.1} parent=1 // pred_region
      %150 = dma.done [#allocation4], 64
    $region29: #{tpu_custom_call.1} parent=1 // pred_fallthru
      _
    %151 = vsyncpa [#allocation3], 1
    %152 = vsyncpa [#allocation6], 1
    %153 = vsyncpa [#allocation4], 1

</llo_original>
